<compile_context>
chip_gen: v6e
topology: v6e:2x2x1
jax: 0.10.0
libtpu: 0.0.40
codegen_flags: <defaults>
</compile_context>

<pallas_src>
import jax
import jax.numpy as jnp
from jax.experimental import pallas as pl
from jax.experimental.pallas import tpu as pltpu


def lstm_kernel(x_ref, len_ref, wih_ref, whh_ref, b_ref, wfc_ref, bfc_ref,
                out_ref):
    """x:(T,B,D) f32, len:(B,1) i32, wih:(D,4H) f32, whh:(H,4H) bf16,
       b:(1,4H) f32, wfc:(H,O) f32, bfc:(1,O) f32 -> out:(B,O) f32."""
    T, B, D = x_ref.shape
    H = whh_ref.shape[0]

    # --- hoisted, non-recurrent work (off the serial critical path) ---------
    # One well-shaped matmul for the whole sequence + fused (b_ih + b_hh) bias.
    x_all = x_ref[...].reshape(T * B, D)                  # collapse leading dims
    pre = (jnp.dot(x_all, wih_ref[...], preferred_element_type=jnp.float32)
           + b_ref[...])                                  # (T*B, 4H) f32

    whh = whh_ref[...]                                    # (H, 4H) bf16, loaded once
    # Hoist the (B,1)->(B,H) length broadcast out of the loop.
    len_bh = jnp.broadcast_to(len_ref[...], (B, H))       # (B, H) int32

    h = jnp.zeros((B, H), jnp.float32)
    c = jnp.zeros((B, H), jnp.float32)

    # --- recurrent chain: T is small & static -> fully unrolled -------------
    for t in range(T):
        # bf16 x bf16 operands, f32 accumulation: single native MXU pass/step.
        gates = pre[t * B:(t + 1) * B, :] + jnp.dot(
            h.astype(jnp.bfloat16), whh,
            preferred_element_type=jnp.float32)           # (B, 4H) f32

        # One full-vreg sigmoid + tanh (2 EUP pushes), then slice the 32-lane
        # i/f/g/o chunks (lane-offset slices of one vreg -> XLU rotates).
        # PyTorch gate order: i, f, g, o.
        sg = jax.nn.sigmoid(gates)
        tg = jnp.tanh(gates)
        i = sg[:, 0 * H:1 * H]
        f = sg[:, 1 * H:2 * H]
        g = tg[:, 2 * H:3 * H]
        o = sg[:, 3 * H:4 * H]

        c_new = f * c + i * g
        h_new = o * jnp.tanh(c_new)

        # packed-sequence semantics: freeze state for t >= lengths[b]
        mask = len_bh > t                                 # cheap VALU compare
        c = jnp.where(mask, c_new, c)
        h = jnp.where(mask, h_new, h)

    # Final Linear.  O=8 -> one masked (lane-sparse) store; negligible here,
    # pad O to a multiple of 128 in the wrapper if output width ever grows.
    out_ref[...] = (jnp.dot(h, wfc_ref[...], preferred_element_type=jnp.float32)
                    + bfc_ref[...]).astype(out_ref.dtype)


def prepare_lstm_params(params):
    """One-time weight massaging; keep this OUT of the per-call forward path."""
    H = params["w_hh"].shape[1]
    O = params["w_fc"].shape[0]
    return {
        "wih": params["w_ih"].T.astype(jnp.float32),                    # (D, 4H)
        "whh": params["w_hh"].T.astype(jnp.bfloat16),                   # (H, 4H) bf16 MXU operand
        "b": (params["b_ih"] + params["b_hh"]).reshape(1, 4 * H).astype(jnp.float32),
        "wfc": params["w_fc"].T.astype(jnp.float32),                    # (H, O)
        "bfc": params["b_fc"].reshape(1, O).astype(jnp.float32),
    }


@jax.jit
def lstm_model_forward(x, lengths, prep):
    """x: (B, T, D) float32, lengths: (B,) ints (all >= 1), prep from
    prepare_lstm_params -> (B, output_size) float32."""
    B, T, D = x.shape
    O = prep["wfc"].shape[1]

    # TODO(synk): feed x time-major from the caller to drop this (tiny) transpose.
    x_tm = jnp.transpose(x, (1, 0, 2))                    # (T, B, D)
    len2d = lengths.astype(jnp.int32).reshape(B, 1)

    vmem = pl.BlockSpec(memory_space=pltpu.MemorySpace.VMEM)
    return pl.pallas_call(
        lstm_kernel,
        out_shape=jax.ShapeDtypeStruct((B, O), jnp.float32),
        in_specs=[vmem] * 7,
        out_specs=vmem,
    )(x_tm, len2d, prep["wih"], prep["whh"], prep["b"], prep["wfc"], prep["bfc"])


def reference_forward(x, lengths, params):
    """Pure-JAX f32 reference with identical semantics (matches PyTorch)."""
    w_ih, w_hh, b_ih, b_hh, w_fc, b_fc = (
        params["w_ih"], params["w_hh"], params["b_ih"], params["b_hh"],
        params["w_fc"], params["b_fc"])
    B, T, D = x.shape
    H = w_hh.shape[1]
    h = jnp.zeros((B, H), jnp.float32)
    c = jnp.zeros((B, H), jnp.float32)
    for t in range(T):
        g = x[:, t, :] @ w_ih.T + h @ w_hh.T + b_ih + b_hh
        i = jax.nn.sigmoid(g[:, 0 * H:1 * H])
        f = jax.nn.sigmoid(g[:, 1 * H:2 * H])
        gg = jnp.tanh(g[:, 2 * H:3 * H])
        o = jax.nn.sigmoid(g[:, 3 * H:4 * H])
        c_new = f * c + i * gg
        h_new = o * jnp.tanh(c_new)
        m = (lengths > t).reshape(B, 1)
        c = jnp.where(m, c_new, c)
        h = jnp.where(m, h_new, h)
    return h @ w_fc.T + b_fc


if __name__ == "__main__":
    B, T, D, H, O = 8, 8, 16, 32, 8

    key = jax.random.PRNGKey(0)
    ks = jax.random.split(key, 8)
    k = 1.0 / jnp.sqrt(H)
    params = {
        "w_ih": jax.random.uniform(ks[0], (4 * H, D), jnp.float32, -k, k),
        "w_hh": jax.random.uniform(ks[1], (4 * H, H), jnp.float32, -k, k),
        "b_ih": jax.random.uniform(ks[2], (4 * H,), jnp.float32, -k, k),
        "b_hh": jax.random.uniform(ks[3], (4 * H,), jnp.float32, -k, k),
        "w_fc": jax.random.uniform(ks[4], (O, H), jnp.float32, -k, k),
        "b_fc": jax.random.uniform(ks[5], (O,), jnp.float32, -k, k),
    }

    x = jax.random.normal(ks[6], (B, T, D), jnp.float32)
    lengths = jnp.array([8, 6, 5, 3, 7, 1, 4, 2], dtype=jnp.int32)
    # pack_padded_sequence precondition: every sequence has length >= 1.
    assert int(lengths.min()) >= 1

    prep = prepare_lstm_params(params)        # one-time, outside the hot path
    out = lstm_model_forward(x, lengths, prep)
    out = jax.block_until_ready(out)

    ref = reference_forward(x, lengths, params)
    assert out.shape == (B, O)
    # bf16 recurrent-matmul operands (f32 accumulation) => slightly looser
    # tolerance than a pure-f32 comparison.
    err = float(jnp.max(jnp.abs(out - ref)))
    assert jnp.allclose(out, ref, atol=2e-2, rtol=2e-2), err

    print("KERNEL_OK")
</pallas_src>

<mosaic_0001>
module attributes {stable_mosaic.version = 11 : i64} {
  func.func @lstm_kernel(%arg0: memref<8x8x16xf32, #tpu.memory_space<vmem>>, %arg1: memref<8x1xi32, #tpu.memory_space<vmem>>, %arg2: memref<16x128xf32, #tpu.memory_space<vmem>>, %arg3: memref<32x128xbf16, #tpu.memory_space<vmem>>, %arg4: memref<1x128xf32, #tpu.memory_space<vmem>>, %arg5: memref<32x8xf32, #tpu.memory_space<vmem>>, %arg6: memref<1x8xf32, #tpu.memory_space<vmem>>, %arg7: memref<8x8xf32, #tpu.memory_space<vmem>>) attributes {dimension_semantics = [], scalar_prefetch = 0 : i64, scratch_operands = 0 : i64, tpu.core_type = #tpu.core_type<tc>} {
    %c0 = arith.constant 0 : index
    %c0_0 = arith.constant 0 : index
    %c0_1 = arith.constant 0 : index
    %0 = vector.load %arg0[%c0, %c0_0, %c0_1] : memref<8x8x16xf32, #tpu.memory_space<vmem>>, vector<8x8x16xf32>
    %1 = vector.shape_cast %0 : vector<8x8x16xf32> to vector<64x16xf32>
    %c0_2 = arith.constant 0 : index
    %c0_3 = arith.constant 0 : index
    %2 = vector.load %arg2[%c0_2, %c0_3] : memref<16x128xf32, #tpu.memory_space<vmem>>, vector<16x128xf32>
    %cst = arith.constant dense<0.000000e+00> : vector<64x128xf32>
    %3 = tpu.matmul %1, %2, %cst {dimension_numbers = #tpu.dot_dimension_numbers<[1], [0], [0], [1], [0, 0, 1, 1], [], []>} : vector<64x16xf32>, vector<16x128xf32>, vector<64x128xf32> -> vector<64x128xf32>
    %c0_4 = arith.constant 0 : index
    %c0_5 = arith.constant 0 : index
    %4 = vector.load %arg4[%c0_4, %c0_5] : memref<1x128xf32, #tpu.memory_space<vmem>>, vector<1x128xf32>
    %5 = vector.broadcast %4 : vector<1x128xf32> to vector<64x128xf32>
    %6 = arith.addf %3, %5 : vector<64x128xf32>
    %c0_6 = arith.constant 0 : index
    %c0_7 = arith.constant 0 : index
    %7 = vector.load %arg3[%c0_6, %c0_7] : memref<32x128xbf16, #tpu.memory_space<vmem>>, vector<32x128xbf16>
    %c0_8 = arith.constant 0 : index
    %c0_9 = arith.constant 0 : index
    %8 = vector.load %arg1[%c0_8, %c0_9] : memref<8x1xi32, #tpu.memory_space<vmem>>, vector<8x1xi32>
    %9 = vector.shape_cast %8 : vector<8x1xi32> to vector<8x1xi32>
    %10 = vector.broadcast %9 : vector<8x1xi32> to vector<8x32xi32>
    %cst_10 = arith.constant 0.000000e+00 : f32
    %11 = vector.broadcast %cst_10 : f32 to vector<8x32xf32>
    %cst_11 = arith.constant 0.000000e+00 : f32
    %12 = vector.broadcast %cst_11 : f32 to vector<8x32xf32>
    %13 = vector.extract_strided_slice %6 {offsets = [0, 0], sizes = [8, 128], strides = [1, 1]} : vector<64x128xf32> to vector<8x128xf32>
    %14 = arith.truncf %11 : vector<8x32xf32> to vector<8x32xbf16>
    %cst_12 = arith.constant dense<0.000000e+00> : vector<8x128xf32>
    %15 = tpu.matmul %14, %7, %cst_12 {dimension_numbers = #tpu.dot_dimension_numbers<[1], [0], [0], [1], [0, 0, 1, 1], [], []>} : vector<8x32xbf16>, vector<32x128xbf16>, vector<8x128xf32> -> vector<8x128xf32>
    %16 = arith.addf %13, %15 : vector<8x128xf32>
    %17 = arith.negf %16 : vector<8x128xf32>
    %18 = math.exp %17 : vector<8x128xf32>
    %cst_13 = arith.constant 1.000000e+00 : f32
    %19 = vector.broadcast %cst_13 : f32 to vector<8x128xf32>
    %20 = arith.addf %19, %18 : vector<8x128xf32>
    %21 = arith.divf %19, %20 : vector<8x128xf32>
    %22 = math.tanh %16 : vector<8x128xf32>
    %23 = vector.extract_strided_slice %21 {offsets = [0, 0], sizes = [8, 32], strides = [1, 1]} : vector<8x128xf32> to vector<8x32xf32>
    %24 = vector.extract_strided_slice %21 {offsets = [0, 32], sizes = [8, 32], strides = [1, 1]} : vector<8x128xf32> to vector<8x32xf32>
    %25 = vector.extract_strided_slice %22 {offsets = [0, 64], sizes = [8, 32], strides = [1, 1]} : vector<8x128xf32> to vector<8x32xf32>
    %26 = vector.extract_strided_slice %21 {offsets = [0, 96], sizes = [8, 32], strides = [1, 1]} : vector<8x128xf32> to vector<8x32xf32>
    %27 = arith.mulf %24, %12 : vector<8x32xf32>
    %28 = arith.mulf %23, %25 : vector<8x32xf32>
    %29 = arith.addf %27, %28 : vector<8x32xf32>
    %30 = math.tanh %29 : vector<8x32xf32>
    %31 = arith.mulf %26, %30 : vector<8x32xf32>
    %c0_i32 = arith.constant 0 : i32
    %32 = vector.broadcast %c0_i32 : i32 to vector<8x32xi32>
    %33 = arith.cmpi sgt, %10, %32 : vector<8x32xi32>
    %34 = arith.select %33, %29, %12 : vector<8x32xi1>, vector<8x32xf32>
    %35 = arith.select %33, %31, %11 : vector<8x32xi1>, vector<8x32xf32>
    %36 = vector.extract_strided_slice %6 {offsets = [8, 0], sizes = [8, 128], strides = [1, 1]} : vector<64x128xf32> to vector<8x128xf32>
    %37 = arith.truncf %35 : vector<8x32xf32> to vector<8x32xbf16>
    %cst_14 = arith.constant dense<0.000000e+00> : vector<8x128xf32>
    %38 = tpu.matmul %37, %7, %cst_14 {dimension_numbers = #tpu.dot_dimension_numbers<[1], [0], [0], [1], [0, 0, 1, 1], [], []>} : vector<8x32xbf16>, vector<32x128xbf16>, vector<8x128xf32> -> vector<8x128xf32>
    %39 = arith.addf %36, %38 : vector<8x128xf32>
    %40 = arith.negf %39 : vector<8x128xf32>
    %41 = math.exp %40 : vector<8x128xf32>
    %cst_15 = arith.constant 1.000000e+00 : f32
    %42 = vector.broadcast %cst_15 : f32 to vector<8x128xf32>
    %43 = arith.addf %42, %41 : vector<8x128xf32>
    %44 = arith.divf %42, %43 : vector<8x128xf32>
    %45 = math.tanh %39 : vector<8x128xf32>
    %46 = vector.extract_strided_slice %44 {offsets = [0, 0], sizes = [8, 32], strides = [1, 1]} : vector<8x128xf32> to vector<8x32xf32>
    %47 = vector.extract_strided_slice %44 {offsets = [0, 32], sizes = [8, 32], strides = [1, 1]} : vector<8x128xf32> to vector<8x32xf32>
    %48 = vector.extract_strided_slice %45 {offsets = [0, 64], sizes = [8, 32], strides = [1, 1]} : vector<8x128xf32> to vector<8x32xf32>
    %49 = vector.extract_strided_slice %44 {offsets = [0, 96], sizes = [8, 32], strides = [1, 1]} : vector<8x128xf32> to vector<8x32xf32>
    %50 = arith.mulf %47, %34 : vector<8x32xf32>
    %51 = arith.mulf %46, %48 : vector<8x32xf32>
    %52 = arith.addf %50, %51 : vector<8x32xf32>
    %53 = math.tanh %52 : vector<8x32xf32>
    %54 = arith.mulf %49, %53 : vector<8x32xf32>
    %c1_i32 = arith.constant 1 : i32
    %55 = vector.broadcast %c1_i32 : i32 to vector<8x32xi32>
    %56 = arith.cmpi sgt, %10, %55 : vector<8x32xi32>
    %57 = arith.select %56, %52, %34 : vector<8x32xi1>, vector<8x32xf32>
    %58 = arith.select %56, %54, %35 : vector<8x32xi1>, vector<8x32xf32>
    %59 = vector.extract_strided_slice %6 {offsets = [16, 0], sizes = [8, 128], strides = [1, 1]} : vector<64x128xf32> to vector<8x128xf32>
    %60 = arith.truncf %58 : vector<8x32xf32> to vector<8x32xbf16>
    %cst_16 = arith.constant dense<0.000000e+00> : vector<8x128xf32>
    %61 = tpu.matmul %60, %7, %cst_16 {dimension_numbers = #tpu.dot_dimension_numbers<[1], [0], [0], [1], [0, 0, 1, 1], [], []>} : vector<8x32xbf16>, vector<32x128xbf16>, vector<8x128xf32> -> vector<8x128xf32>
    %62 = arith.addf %59, %61 : vector<8x128xf32>
    %63 = arith.negf %62 : vector<8x128xf32>
    %64 = math.exp %63 : vector<8x128xf32>
    %cst_17 = arith.constant 1.000000e+00 : f32
    %65 = vector.broadcast %cst_17 : f32 to vector<8x128xf32>
    %66 = arith.addf %65, %64 : vector<8x128xf32>
    %67 = arith.divf %65, %66 : vector<8x128xf32>
    %68 = math.tanh %62 : vector<8x128xf32>
    %69 = vector.extract_strided_slice %67 {offsets = [0, 0], sizes = [8, 32], strides = [1, 1]} : vector<8x128xf32> to vector<8x32xf32>
    %70 = vector.extract_strided_slice %67 {offsets = [0, 32], sizes = [8, 32], strides = [1, 1]} : vector<8x128xf32> to vector<8x32xf32>
    %71 = vector.extract_strided_slice %68 {offsets = [0, 64], sizes = [8, 32], strides = [1, 1]} : vector<8x128xf32> to vector<8x32xf32>
    %72 = vector.extract_strided_slice %67 {offsets = [0, 96], sizes = [8, 32], strides = [1, 1]} : vector<8x128xf32> to vector<8x32xf32>
    %73 = arith.mulf %70, %57 : vector<8x32xf32>
    %74 = arith.mulf %69, %71 : vector<8x32xf32>
    %75 = arith.addf %73, %74 : vector<8x32xf32>
    %76 = math.tanh %75 : vector<8x32xf32>
    %77 = arith.mulf %72, %76 : vector<8x32xf32>
    %c2_i32 = arith.constant 2 : i32
    %78 = vector.broadcast %c2_i32 : i32 to vector<8x32xi32>
    %79 = arith.cmpi sgt, %10, %78 : vector<8x32xi32>
    %80 = arith.select %79, %75, %57 : vector<8x32xi1>, vector<8x32xf32>
    %81 = arith.select %79, %77, %58 : vector<8x32xi1>, vector<8x32xf32>
    %82 = vector.extract_strided_slice %6 {offsets = [24, 0], sizes = [8, 128], strides = [1, 1]} : vector<64x128xf32> to vector<8x128xf32>
    %83 = arith.truncf %81 : vector<8x32xf32> to vector<8x32xbf16>
    %cst_18 = arith.constant dense<0.000000e+00> : vector<8x128xf32>
    %84 = tpu.matmul %83, %7, %cst_18 {dimension_numbers = #tpu.dot_dimension_numbers<[1], [0], [0], [1], [0, 0, 1, 1], [], []>} : vector<8x32xbf16>, vector<32x128xbf16>, vector<8x128xf32> -> vector<8x128xf32>
    %85 = arith.addf %82, %84 : vector<8x128xf32>
    %86 = arith.negf %85 : vector<8x128xf32>
    %87 = math.exp %86 : vector<8x128xf32>
    %cst_19 = arith.constant 1.000000e+00 : f32
    %88 = vector.broadcast %cst_19 : f32 to vector<8x128xf32>
    %89 = arith.addf %88, %87 : vector<8x128xf32>
    %90 = arith.divf %88, %89 : vector<8x128xf32>
    %91 = math.tanh %85 : vector<8x128xf32>
    %92 = vector.extract_strided_slice %90 {offsets = [0, 0], sizes = [8, 32], strides = [1, 1]} : vector<8x128xf32> to vector<8x32xf32>
    %93 = vector.extract_strided_slice %90 {offsets = [0, 32], sizes = [8, 32], strides = [1, 1]} : vector<8x128xf32> to vector<8x32xf32>
    %94 = vector.extract_strided_slice %91 {offsets = [0, 64], sizes = [8, 32], strides = [1, 1]} : vector<8x128xf32> to vector<8x32xf32>
    %95 = vector.extract_strided_slice %90 {offsets = [0, 96], sizes = [8, 32], strides = [1, 1]} : vector<8x128xf32> to vector<8x32xf32>
    %96 = arith.mulf %93, %80 : vector<8x32xf32>
    %97 = arith.mulf %92, %94 : vector<8x32xf32>
    %98 = arith.addf %96, %97 : vector<8x32xf32>
    %99 = math.tanh %98 : vector<8x32xf32>
    %100 = arith.mulf %95, %99 : vector<8x32xf32>
    %c3_i32 = arith.constant 3 : i32
    %101 = vector.broadcast %c3_i32 : i32 to vector<8x32xi32>
    %102 = arith.cmpi sgt, %10, %101 : vector<8x32xi32>
    %103 = arith.select %102, %98, %80 : vector<8x32xi1>, vector<8x32xf32>
    %104 = arith.select %102, %100, %81 : vector<8x32xi1>, vector<8x32xf32>
    %105 = vector.extract_strided_slice %6 {offsets = [32, 0], sizes = [8, 128], strides = [1, 1]} : vector<64x128xf32> to vector<8x128xf32>
    %106 = arith.truncf %104 : vector<8x32xf32> to vector<8x32xbf16>
    %cst_20 = arith.constant dense<0.000000e+00> : vector<8x128xf32>
    %107 = tpu.matmul %106, %7, %cst_20 {dimension_numbers = #tpu.dot_dimension_numbers<[1], [0], [0], [1], [0, 0, 1, 1], [], []>} : vector<8x32xbf16>, vector<32x128xbf16>, vector<8x128xf32> -> vector<8x128xf32>
    %108 = arith.addf %105, %107 : vector<8x128xf32>
    %109 = arith.negf %108 : vector<8x128xf32>
    %110 = math.exp %109 : vector<8x128xf32>
    %cst_21 = arith.constant 1.000000e+00 : f32
    %111 = vector.broadcast %cst_21 : f32 to vector<8x128xf32>
    %112 = arith.addf %111, %110 : vector<8x128xf32>
    %113 = arith.divf %111, %112 : vector<8x128xf32>
    %114 = math.tanh %108 : vector<8x128xf32>
    %115 = vector.extract_strided_slice %113 {offsets = [0, 0], sizes = [8, 32], strides = [1, 1]} : vector<8x128xf32> to vector<8x32xf32>
    %116 = vector.extract_strided_slice %113 {offsets = [0, 32], sizes = [8, 32], strides = [1, 1]} : vector<8x128xf32> to vector<8x32xf32>
    %117 = vector.extract_strided_slice %114 {offsets = [0, 64], sizes = [8, 32], strides = [1, 1]} : vector<8x128xf32> to vector<8x32xf32>
    %118 = vector.extract_strided_slice %113 {offsets = [0, 96], sizes = [8, 32], strides = [1, 1]} : vector<8x128xf32> to vector<8x32xf32>
    %119 = arith.mulf %116, %103 : vector<8x32xf32>
    %120 = arith.mulf %115, %117 : vector<8x32xf32>
    %121 = arith.addf %119, %120 : vector<8x32xf32>
    %122 = math.tanh %121 : vector<8x32xf32>
    %123 = arith.mulf %118, %122 : vector<8x32xf32>
    %c4_i32 = arith.constant 4 : i32
    %124 = vector.broadcast %c4_i32 : i32 to vector<8x32xi32>
    %125 = arith.cmpi sgt, %10, %124 : vector<8x32xi32>
    %126 = arith.select %125, %121, %103 : vector<8x32xi1>, vector<8x32xf32>
    %127 = arith.select %125, %123, %104 : vector<8x32xi1>, vector<8x32xf32>
    %128 = vector.extract_strided_slice %6 {offsets = [40, 0], sizes = [8, 128], strides = [1, 1]} : vector<64x128xf32> to vector<8x128xf32>
    %129 = arith.truncf %127 : vector<8x32xf32> to vector<8x32xbf16>
    %cst_22 = arith.constant dense<0.000000e+00> : vector<8x128xf32>
    %130 = tpu.matmul %129, %7, %cst_22 {dimension_numbers = #tpu.dot_dimension_numbers<[1], [0], [0], [1], [0, 0, 1, 1], [], []>} : vector<8x32xbf16>, vector<32x128xbf16>, vector<8x128xf32> -> vector<8x128xf32>
    %131 = arith.addf %128, %130 : vector<8x128xf32>
    %132 = arith.negf %131 : vector<8x128xf32>
    %133 = math.exp %132 : vector<8x128xf32>
    %cst_23 = arith.constant 1.000000e+00 : f32
    %134 = vector.broadcast %cst_23 : f32 to vector<8x128xf32>
    %135 = arith.addf %134, %133 : vector<8x128xf32>
    %136 = arith.divf %134, %135 : vector<8x128xf32>
    %137 = math.tanh %131 : vector<8x128xf32>
    %138 = vector.extract_strided_slice %136 {offsets = [0, 0], sizes = [8, 32], strides = [1, 1]} : vector<8x128xf32> to vector<8x32xf32>
    %139 = vector.extract_strided_slice %136 {offsets = [0, 32], sizes = [8, 32], strides = [1, 1]} : vector<8x128xf32> to vector<8x32xf32>
    %140 = vector.extract_strided_slice %137 {offsets = [0, 64], sizes = [8, 32], strides = [1, 1]} : vector<8x128xf32> to vector<8x32xf32>
    %141 = vector.extract_strided_slice %136 {offsets = [0, 96], sizes = [8, 32], strides = [1, 1]} : vector<8x128xf32> to vector<8x32xf32>
    %142 = arith.mulf %139, %126 : vector<8x32xf32>
    %143 = arith.mulf %138, %140 : vector<8x32xf32>
    %144 = arith.addf %142, %143 : vector<8x32xf32>
    %145 = math.tanh %144 : vector<8x32xf32>
    %146 = arith.mulf %141, %145 : vector<8x32xf32>
    %c5_i32 = arith.constant 5 : i32
    %147 = vector.broadcast %c5_i32 : i32 to vector<8x32xi32>
    %148 = arith.cmpi sgt, %10, %147 : vector<8x32xi32>
    %149 = arith.select %148, %144, %126 : vector<8x32xi1>, vector<8x32xf32>
    %150 = arith.select %148, %146, %127 : vector<8x32xi1>, vector<8x32xf32>
    %151 = vector.extract_strided_slice %6 {offsets = [48, 0], sizes = [8, 128], strides = [1, 1]} : vector<64x128xf32> to vector<8x128xf32>
    %152 = arith.truncf %150 : vector<8x32xf32> to vector<8x32xbf16>
    %cst_24 = arith.constant dense<0.000000e+00> : vector<8x128xf32>
    %153 = tpu.matmul %152, %7, %cst_24 {dimension_numbers = #tpu.dot_dimension_numbers<[1], [0], [0], [1], [0, 0, 1, 1], [], []>} : vector<8x32xbf16>, vector<32x128xbf16>, vector<8x128xf32> -> vector<8x128xf32>
    %154 = arith.addf %151, %153 : vector<8x128xf32>
    %155 = arith.negf %154 : vector<8x128xf32>
    %156 = math.exp %155 : vector<8x128xf32>
    %cst_25 = arith.constant 1.000000e+00 : f32
    %157 = vector.broadcast %cst_25 : f32 to vector<8x128xf32>
    %158 = arith.addf %157, %156 : vector<8x128xf32>
    %159 = arith.divf %157, %158 : vector<8x128xf32>
    %160 = math.tanh %154 : vector<8x128xf32>
    %161 = vector.extract_strided_slice %159 {offsets = [0, 0], sizes = [8, 32], strides = [1, 1]} : vector<8x128xf32> to vector<8x32xf32>
    %162 = vector.extract_strided_slice %159 {offsets = [0, 32], sizes = [8, 32], strides = [1, 1]} : vector<8x128xf32> to vector<8x32xf32>
    %163 = vector.extract_strided_slice %160 {offsets = [0, 64], sizes = [8, 32], strides = [1, 1]} : vector<8x128xf32> to vector<8x32xf32>
    %164 = vector.extract_strided_slice %159 {offsets = [0, 96], sizes = [8, 32], strides = [1, 1]} : vector<8x128xf32> to vector<8x32xf32>
    %165 = arith.mulf %162, %149 : vector<8x32xf32>
    %166 = arith.mulf %161, %163 : vector<8x32xf32>
    %167 = arith.addf %165, %166 : vector<8x32xf32>
    %168 = math.tanh %167 : vector<8x32xf32>
    %169 = arith.mulf %164, %168 : vector<8x32xf32>
    %c6_i32 = arith.constant 6 : i32
    %170 = vector.broadcast %c6_i32 : i32 to vector<8x32xi32>
    %171 = arith.cmpi sgt, %10, %170 : vector<8x32xi32>
    %172 = arith.select %171, %167, %149 : vector<8x32xi1>, vector<8x32xf32>
    %173 = arith.select %171, %169, %150 : vector<8x32xi1>, vector<8x32xf32>
    %174 = vector.extract_strided_slice %6 {offsets = [56, 0], sizes = [8, 128], strides = [1, 1]} : vector<64x128xf32> to vector<8x128xf32>
    %175 = arith.truncf %173 : vector<8x32xf32> to vector<8x32xbf16>
    %cst_26 = arith.constant dense<0.000000e+00> : vector<8x128xf32>
    %176 = tpu.matmul %175, %7, %cst_26 {dimension_numbers = #tpu.dot_dimension_numbers<[1], [0], [0], [1], [0, 0, 1, 1], [], []>} : vector<8x32xbf16>, vector<32x128xbf16>, vector<8x128xf32> -> vector<8x128xf32>
    %177 = arith.addf %174, %176 : vector<8x128xf32>
    %178 = arith.negf %177 : vector<8x128xf32>
    %179 = math.exp %178 : vector<8x128xf32>
    %cst_27 = arith.constant 1.000000e+00 : f32
    %180 = vector.broadcast %cst_27 : f32 to vector<8x128xf32>
    %181 = arith.addf %180, %179 : vector<8x128xf32>
    %182 = arith.divf %180, %181 : vector<8x128xf32>
    %183 = math.tanh %177 : vector<8x128xf32>
    %184 = vector.extract_strided_slice %182 {offsets = [0, 0], sizes = [8, 32], strides = [1, 1]} : vector<8x128xf32> to vector<8x32xf32>
    %185 = vector.extract_strided_slice %182 {offsets = [0, 32], sizes = [8, 32], strides = [1, 1]} : vector<8x128xf32> to vector<8x32xf32>
    %186 = vector.extract_strided_slice %183 {offsets = [0, 64], sizes = [8, 32], strides = [1, 1]} : vector<8x128xf32> to vector<8x32xf32>
    %187 = vector.extract_strided_slice %182 {offsets = [0, 96], sizes = [8, 32], strides = [1, 1]} : vector<8x128xf32> to vector<8x32xf32>
    %188 = arith.mulf %185, %172 : vector<8x32xf32>
    %189 = arith.mulf %184, %186 : vector<8x32xf32>
    %190 = arith.addf %188, %189 : vector<8x32xf32>
    %191 = math.tanh %190 : vector<8x32xf32>
    %192 = arith.mulf %187, %191 : vector<8x32xf32>
    %c7_i32 = arith.constant 7 : i32
    %193 = vector.broadcast %c7_i32 : i32 to vector<8x32xi32>
    %194 = arith.cmpi sgt, %10, %193 : vector<8x32xi32>
    %195 = arith.select %194, %192, %173 : vector<8x32xi1>, vector<8x32xf32>
    %c0_28 = arith.constant 0 : index
    %c0_29 = arith.constant 0 : index
    %196 = vector.load %arg5[%c0_28, %c0_29] : memref<32x8xf32, #tpu.memory_space<vmem>>, vector<32x8xf32>
    %cst_30 = arith.constant dense<0.000000e+00> : vector<8x8xf32>
    %197 = tpu.matmul %195, %196, %cst_30 {dimension_numbers = #tpu.dot_dimension_numbers<[1], [0], [0], [1], [0, 0, 1, 1], [], []>} : vector<8x32xf32>, vector<32x8xf32>, vector<8x8xf32> -> vector<8x8xf32>
    %c0_31 = arith.constant 0 : index
    %c0_32 = arith.constant 0 : index
    %198 = vector.load %arg6[%c0_31, %c0_32] : memref<1x8xf32, #tpu.memory_space<vmem>>, vector<1x8xf32>
    %199 = vector.broadcast %198 : vector<1x8xf32> to vector<8x8xf32>
    %200 = arith.addf %197, %199 : vector<8x8xf32>
    %c0_33 = arith.constant 0 : index
    %c0_34 = arith.constant 0 : index
    %201 = vector.load %arg7[%c0_33, %c0_34] : memref<8x8xf32, #tpu.memory_space<vmem>>, vector<8x8xf32>
    tpu.vector_store %arg7[%c0_33, %c0_34], %200 {strides = array<i32>} : memref<8x8xf32, #tpu.memory_space<vmem>>, vector<8x8xf32>,
    return
  }
}

</mosaic_0001>

<llo_original>
// kernel: lstm_model_forward.1
$region0: #{lstm_model_forward.1}
  #allocation0 [shape = 'u32[]', space=smem, size = 0x4, offset = 0x4, fixed_abs, tag = 'smem constant byte address 0x4 - core index']
  #allocation1 [shape = 'u32[144,128]{1,0:T(1,128)}', space=vmem, size = 0x12000, scoped, tag = 'internal scratch']
  %s0 = inlined_call_operand.vmem [shape: f32[8,8,16], index: 0, kind: input, shape index: {}]
  %s1 = inlined_call_operand.vmem [shape: s32[8,1], index: 1, kind: input, shape index: {}]
  %s2 = inlined_call_operand.vmem [shape: f32[16,128], index: 2, kind: input, shape index: {}]
  %s3 = inlined_call_operand.vmem [shape: bf16[32,128], index: 3, kind: input, shape index: {}]
  %s4 = inlined_call_operand.vmem [shape: f32[1,128], index: 4, kind: input, shape index: {}]
  %s5 = inlined_call_operand.vmem [shape: f32[32,8], index: 5, kind: input, shape index: {}]
  %s6 = inlined_call_operand.vmem [shape: f32[1,8], index: 6, kind: input, shape index: {}]
  %s7 = inlined_call_operand.hbm [shape: f32[8,8], index: 7, kind: output, shape index: {}]
  %s8 = sld [smem:[#allocation0]]
  $region38: #{lstm_model_forward.1} parent=0
    _
  %s10 = ssub.s32 1, %s8
  %s11 = scalar_select 0, %s10, %s8
  $region1: #{lstm_model_forward.1} parent=0
    #allocation2 [shape = 'u8[4096]{0}', space=vmem, size = 0x1000, scoped, tag = 'output window, operand 0, single buffered']
    #allocation3 [shape = 's32[1]{0}', space=sflag, size = 0x4, scoped, tag = 'scoped memory for lstm_model_forward.1']
    %12 = vsyncpa [#allocation3], 0
    // Predicated region
    $region2: #{lstm_model_forward.1} parent=1 // pred_check
      _
    $region3: #{lstm_model_forward.1} parent=1 // pred_check_branch
      %14 = sbr.rel (0) target = $region5
    $region4: #{lstm_model_forward.1} parent=1 // pred_region
      _
    $region5: #{lstm_model_forward.1} parent=1 // pred_fallthru
      _
    // Predicated region
    $region6: #{lstm_model_forward.1} parent=1 // pred_check
      _
    $region7: #{lstm_model_forward.1} parent=1 // pred_check_branch
      %16 = sbr.rel (0) target = $region9
    $region8: #{lstm_model_forward.1} parent=1 // pred_region
      _
    $region9: #{lstm_model_forward.1} parent=1 // pred_fallthru
      _
    // Predicated region
    $region10: #{lstm_model_forward.1} parent=1 // pred_check
      _
    $region11: #{lstm_model_forward.1} parent=1 // pred_check_branch
      %18 = sbr.rel (0) target = $region13
    $region12: #{lstm_model_forward.1} parent=1 // pred_region
      _
    $region13: #{lstm_model_forward.1} parent=1 // pred_fallthru
      _
    // Predicated region
    $region14: #{lstm_model_forward.1} parent=1 // pred_check
      _
    $region15: #{lstm_model_forward.1} parent=1 // pred_check_branch
      %20 = sbr.rel (0) target = $region17
    $region16: #{lstm_model_forward.1} parent=1 // pred_region
      _
    $region17: #{lstm_model_forward.1} parent=1 // pred_fallthru
      _
    // Predicated region
    $region18: #{lstm_model_forward.1} parent=1 // pred_check
      _
    $region19: #{lstm_model_forward.1} parent=1 // pred_check_branch
      %22 = sbr.rel (0) target = $region21
    $region20: #{lstm_model_forward.1} parent=1 // pred_region
      _
    $region21: #{lstm_model_forward.1} parent=1 // pred_fallthru
      _
    // Predicated region
    $region22: #{lstm_model_forward.1} parent=1 // pred_check
      _
    $region23: #{lstm_model_forward.1} parent=1 // pred_check_branch
      %24 = sbr.rel (0) target = $region25
    $region24: #{lstm_model_forward.1} parent=1 // pred_region
      _
    $region25: #{lstm_model_forward.1} parent=1 // pred_fallthru
      _
    // Predicated region
    $region26: #{lstm_model_forward.1} parent=1 // pred_check
      _
    $region27: #{lstm_model_forward.1} parent=1 // pred_check_branch
      %26 = sbr.rel (0) target = $region29
    $region28: #{lstm_model_forward.1} parent=1 // pred_region
      _
    $region29: #{lstm_model_forward.1} parent=1 // pred_fallthru
      _
    %v28 = vld [vmem:[%s0] sm:$0xff]
    %v29 = vld [vmem:[%s0 + $0x8] sm:$0xff]
    %v30 = vld [vmem:[%s0 + $0x10] sm:$0xff]
    %v31 = vld [vmem:[%s0 + $0x18] sm:$0xff]
    %v32 = vld [vmem:[%s0 + $0x20] sm:$0xff]
    %v33 = vld [vmem:[%s0 + $0x28] sm:$0xff]
    %v34 = vld [vmem:[%s0 + $0x30] sm:$0xff]
    %v35 = vld [vmem:[%s0 + $0x38] sm:$0xff]
    %v36 = vld [vmem:[%s2] sm:$0xff]
    %v37 = vld [vmem:[%s2 + $0x8] sm:$0xff]
    %v38 = vld [vmem:[%s4] sm:$0x1]
    %v40 = vlaneseq
    %v41 = vshrl.u32 %v40, 7
    %v42 = vsub.s32 0, %v41
    %v43 = vrot.slane %v38, %v42
    %vm45 = vcmask 130048
    %v47 = vsel %vm45, %v28, 0
    %v50 = vsel %vm45, %v29, 0
    %v53 = vsel %vm45, %v30, 0
    %v56 = vsel %vm45, %v31, 0
    %v59 = vsel %vm45, %v32, 0
    %v62 = vsel %vm45, %v33, 0
    %v65 = vsel %vm45, %v34, 0
    %v68 = vsel %vm45, %v35, 0
    %70 = vmatprep.subr.mxu0 0.0
    %71 = vmatpush1.msra.mxu0 0.0
    %72 = vmatprep.subr.mxu0 0.0
    %73 = vmatpush1.msra.mxu0 0.0
    %74 = vmatprep.subr.mxu0 0.0
    %75 = vmatpush1.msra.mxu0 0.0
    %76 = vmatprep.subr.mxu0 0.0
    %77 = vmatpush1.msra.mxu0 0.0
    %78 = vmatprep.subr.mxu0 0.0
    %79 = vmatpush1.msra.mxu0 0.0
    %80 = vmatprep.subr.mxu0 0.0
    %81 = vmatpush1.msra.mxu0 0.0
    %82 = vmatprep.subr.mxu0 0.0
    %83 = vmatpush1.msra.mxu0 0.0
    %84 = vmatprep.subr.mxu0 0.0
    %85 = vmatpush1.msra.mxu0 0.0
    %86 = vmatprep.subr.mxu0 0.0
    %87 = vmatpush1.msra.mxu0 0.0
    %88 = vmatprep.subr.mxu0 0.0
    %89 = vmatpush1.msra.mxu0 0.0
    %90 = vmatprep.subr.mxu0 0.0
    %91 = vmatpush1.msra.mxu0 0.0
    %92 = vmatprep.subr.mxu0 0.0
    %93 = vmatpush1.msra.mxu0 0.0
    %94 = vmatprep.subr.mxu0 0.0
    %95 = vmatpush1.msra.mxu0 0.0
    %96 = vmatprep.subr.mxu0 0.0
    %97 = vmatpush1.msra.mxu0 0.0
    %98 = vmatprep.subr.mxu0 0.0
    %99 = vmatpush1.msra.mxu0 %v37
    %100 = vmatprep.subr.mxu0 0.0
    %101 = vmatpush1.msra.mxu0 %v36
    %102 = vmatprep.subr.mxu0 0.0
    %103 = vmatpush2.msra.mxu0 0.0
    %104 = vmatprep.subr.mxu0 0.0
    %105 = vmatpush2.msra.mxu0 0.0
    %106 = vmatprep.subr.mxu0 0.0
    %107 = vmatpush2.msra.mxu0 0.0
    %108 = vmatprep.subr.mxu0 0.0
    %109 = vmatpush2.msra.mxu0 0.0
    %110 = vmatprep.subr.mxu0 0.0
    %111 = vmatpush2.msra.mxu0 0.0
    %112 = vmatprep.subr.mxu0 0.0
    %113 = vmatpush2.msra.mxu0 0.0
    %114 = vmatprep.subr.mxu0 0.0
    %115 = vmatpush2.msra.mxu0 0.0
    %116 = vmatprep.subr.mxu0 0.0
    %117 = vmatpush2.msra.mxu0 0.0
    %118 = vmatprep.subr.mxu0 0.0
    %119 = vmatpush2.msra.mxu0 0.0
    %120 = vmatprep.subr.mxu0 0.0
    %121 = vmatpush2.msra.mxu0 0.0
    %122 = vmatprep.subr.mxu0 0.0
    %123 = vmatpush2.msra.mxu0 0.0
    %124 = vmatprep.subr.mxu0 0.0
    %125 = vmatpush2.msra.mxu0 0.0
    %126 = vmatprep.subr.mxu0 0.0
    %127 = vmatpush2.msra.mxu0 0.0
    %128 = vmatprep.subr.mxu0 0.0
    %129 = vmatpush2.msra.mxu0 0.0
    %130 = vmatprep.subr.mxu0 0.0
    %131 = vmatpush2.msra.mxu0 0.0
    %132 = vmatprep.subr.mxu0 0.0
    %133 = vmatpush2.msra.mxu0 0.0
    %134 = vmatprep.mubr.f32.mxu0 0.0
    %135 = vmatmul.mubr.f32.gmra.mxu0 %v47
    %v136 = vpop.f32.mrf.mxu0
    %v137 = vadd.f32 %v43, %v136
    %v138 = vpop.f32.mrf.mxu0
    %139 = vmatprep.mubr.f32.mxu0 0.0
    %140 = vmatmul.mubr.f32.gmra.mxu0 %v50
    %v141 = vpop.f32.mrf.mxu0
    %v142 = vadd.f32 %v43, %v141
    %v143 = vpop.f32.mrf.mxu0
    %144 = vmatprep.mubr.f32.mxu0 0.0
    %145 = vmatmul.mubr.f32.gmra.mxu0 %v53
    %v146 = vpop.f32.mrf.mxu0
    %v147 = vadd.f32 %v43, %v146
    %v148 = vpop.f32.mrf.mxu0
    %149 = vmatprep.mubr.f32.mxu0 0.0
    %150 = vmatmul.mubr.f32.gmra.mxu0 %v56
    %v151 = vpop.f32.mrf.mxu0
    %v152 = vadd.f32 %v43, %v151
    %v153 = vpop.f32.mrf.mxu0
    %154 = vmatprep.mubr.f32.mxu0 0.0
    %155 = vmatmul.mubr.f32.gmra.mxu0 %v59
    %v156 = vpop.f32.mrf.mxu0
    %v157 = vadd.f32 %v43, %v156
    %v158 = vpop.f32.mrf.mxu0
    %159 = vmatprep.mubr.f32.mxu0 0.0
    %160 = vmatmul.mubr.f32.gmra.mxu0 %v62
    %v161 = vpop.f32.mrf.mxu0
    %v162 = vadd.f32 %v43, %v161
    %v163 = vpop.f32.mrf.mxu0
    %164 = vmatprep.mubr.f32.mxu0 0.0
    %165 = vmatmul.mubr.f32.gmra.mxu0 %v65
    %v166 = vpop.f32.mrf.mxu0
    %v167 = vadd.f32 %v43, %v166
    %v168 = vpop.f32.mrf.mxu0
    %169 = vmatprep.mubr.f32.mxu0 0.0
    %170 = vmatmul.mubr.f32.gmra.mxu0 %v68
    %v171 = vpop.f32.mrf.mxu0
    %v172 = vadd.f32 %v43, %v171
    %v173 = vpop.f32.mrf.mxu0
    %174 = vdwg.mxu0
    %v175 = vld [vmem:[%s3] sm:$0xf]
    %v176 = vld [vmem:[%s3 + $0x4] sm:$0xf]
    %v177 = vld [vmem:[%s3 + $0x8] sm:$0xf]
    %v178 = vld [vmem:[%s3 + $0xc] sm:$0xf]
    %v179 = vld [vmem:[%s1] sm:$0xff]
    %180 = vset.pattern.permute.xlu0 0
    %181 = vperm.xlu0 %180, %v179
    %v182 = vpop.permute.xlu0 %181
    %v187 = vunpack.c.l.b16 %v175
    %v188 = vunpack.c.l.b16 %v176
    %v189 = vunpack.c.l.b16 %v177
    %v190 = vunpack.c.l.b16 %v178
    %v191 = vpack.c.b16 %v188, %v187
    %v192 = vpack.c.b16 %v190, %v189
    %vm195 = vcmask 261120
    %v197 = vsel %vm195, 0, 0
    %199 = vmatprep.subr.bf16.mxu0 0
    %200 = vmatpush1.bf16.msra.mxu0 0
    %201 = vmatprep.subr.bf16.mxu0 0
    %202 = vmatpush1.bf16.msra.mxu0 0
    %203 = vmatprep.subr.bf16.mxu0 0
    %204 = vmatpush1.bf16.msra.mxu0 0
    %205 = vmatprep.subr.bf16.mxu0 0
    %206 = vmatpush1.bf16.msra.mxu0 0
    %207 = vmatprep.subr.bf16.mxu0 0
    %208 = vmatpush1.bf16.msra.mxu0 0
    %209 = vmatprep.subr.bf16.mxu0 0
    %210 = vmatpush1.bf16.msra.mxu0 0
    %211 = vmatprep.subr.bf16.mxu0 0
    %212 = vmatpush1.bf16.msra.mxu0 %v192
    %213 = vmatprep.subr.bf16.mxu0 0
    %214 = vmatpush1.bf16.msra.mxu0 %v191
    %215 = vmatprep.subr.bf16.mxu0 0
    %216 = vmatpush2.bf16.msra.mxu0 0
    %217 = vmatprep.subr.bf16.mxu0 0
    %218 = vmatpush2.bf16.msra.mxu0 0
    %219 = vmatprep.subr.bf16.mxu0 0
    %220 = vmatpush2.bf16.msra.mxu0 0
    %221 = vmatprep.subr.bf16.mxu0 0
    %222 = vmatpush2.bf16.msra.mxu0 0
    %223 = vmatprep.subr.bf16.mxu0 0
    %224 = vmatpush2.bf16.msra.mxu0 0
    %225 = vmatprep.subr.bf16.mxu0 0
    %226 = vmatpush2.bf16.msra.mxu0 0
    %227 = vmatprep.subr.bf16.mxu0 0
    %228 = vmatpush2.bf16.msra.mxu0 0
    %229 = vmatprep.subr.bf16.mxu0 0
    %230 = vmatpush2.bf16.msra.mxu0 0
    %231 = vmatprep.mubr.bf16.mxu0 0
    %232 = vmatmul.mubr.bf16.gmra.mxu0 %v197
    %v233 = vpop.f32.mrf.mxu0
    %v234 = vadd.f32 0.0, %v233
    %v235 = vpop.f32.mrf.mxu0
    %v236 = vpop.f32.mrf.mxu0
    %v237 = vpop.f32.mrf.mxu0
    %238 = vdwg.mxu0
    %v239 = vadd.f32 %v137, %v234
    %v240 = vxor.u32 %v239, 2147483648
    %v241 = vmul.f32 %v240, 1.442695
    %v242 = vpow.pop %v241
    %v243 = vadd.f32 %v242, 1.0
    %v244 = vrcp.pop %v243
    %v245 = vmul.f32 1.0, %v244
    %v246 = vtanh.pop %v239
    %v247 = vmul.f32 %v245, 0.0
    %249 = vrot.lane.b32.xlu0 %v246, 64
    %v250 = vpop.permute.xlu0 %249
    %v252 = vmul.f32 %v245, %v250
    %254 = vrot.lane.b32.xlu0 %v252, 32
    %v255 = vpop.permute.xlu0 %254
    %v257 = vadd.f32 %v247, %v255
    %v258 = vtanh.pop %v257
    %260 = vrot.lane.b32.xlu0 %v258, 64
    %v261 = vpop.permute.xlu0 %260
    %v263 = vmul.f32 %v245, %v261
    %vm264 = vcmp.gt.s32.totalorder %v182, 0
    %v265 = vsel %vm264, %v257, 0.0
    %v266 = vsel %vm264, %v263, 0.0
    %v267 = vpack.c.bf16 %v266, %v266
    %269 = vrot.lane.b32.xlu0 %v267, 32
    %v270 = vpop.permute.xlu0 %269
    %v272 = vsel %vm195, %v270, 0
    %274 = vmatprep.subr.bf16.mxu0 0
    %275 = vmatpush1.bf16.msra.mxu0 0
    %276 = vmatprep.subr.bf16.mxu0 0
    %277 = vmatpush1.bf16.msra.mxu0 0
    %278 = vmatprep.subr.bf16.mxu0 0
    %279 = vmatpush1.bf16.msra.mxu0 0
    %280 = vmatprep.subr.bf16.mxu0 0
    %281 = vmatpush1.bf16.msra.mxu0 0
    %282 = vmatprep.subr.bf16.mxu0 0
    %283 = vmatpush1.bf16.msra.mxu0 0
    %284 = vmatprep.subr.bf16.mxu0 0
    %285 = vmatpush1.bf16.msra.mxu0 0
    %286 = vmatprep.subr.bf16.mxu0 0
    %287 = vmatpush1.bf16.msra.mxu0 %v192
    %288 = vmatprep.subr.bf16.mxu0 0
    %289 = vmatpush1.bf16.msra.mxu0 %v191
    %290 = vmatprep.subr.bf16.mxu0 0
    %291 = vmatpush2.bf16.msra.mxu0 0
    %292 = vmatprep.subr.bf16.mxu0 0
    %293 = vmatpush2.bf16.msra.mxu0 0
    %294 = vmatprep.subr.bf16.mxu0 0
    %295 = vmatpush2.bf16.msra.mxu0 0
    %296 = vmatprep.subr.bf16.mxu0 0
    %297 = vmatpush2.bf16.msra.mxu0 0
    %298 = vmatprep.subr.bf16.mxu0 0
    %299 = vmatpush2.bf16.msra.mxu0 0
    %300 = vmatprep.subr.bf16.mxu0 0
    %301 = vmatpush2.bf16.msra.mxu0 0
    %302 = vmatprep.subr.bf16.mxu0 0
    %303 = vmatpush2.bf16.msra.mxu0 0
    %304 = vmatprep.subr.bf16.mxu0 0
    %305 = vmatpush2.bf16.msra.mxu0 0
    %306 = vmatprep.mubr.bf16.mxu0 0
    %307 = vmatmul.mubr.bf16.gmra.mxu0 %v272
    %v308 = vpop.f32.mrf.mxu0
    %v309 = vadd.f32 0.0, %v308
    %v310 = vpop.f32.mrf.mxu0
    %v311 = vpop.f32.mrf.mxu0
    %v312 = vpop.f32.mrf.mxu0
    %313 = vdwg.mxu0
    %v314 = vadd.f32 %v142, %v309
    %v315 = vxor.u32 %v314, 2147483648
    %v316 = vmul.f32 %v315, 1.442695
    %v317 = vpow.pop %v316
    %v318 = vadd.f32 %v317, 1.0
    %v319 = vrcp.pop %v318
    %v320 = vmul.f32 1.0, %v319
    %v321 = vtanh.pop %v314
    %v322 = vmul.f32 %v320, %v265
    %324 = vrot.lane.b32.xlu0 %v321, 64
    %v325 = vpop.permute.xlu0 %324
    %v327 = vmul.f32 %v320, %v325
    %329 = vrot.lane.b32.xlu0 %v327, 32
    %v330 = vpop.permute.xlu0 %329
    %v332 = vadd.f32 %v322, %v330
    %v333 = vtanh.pop %v332
    %335 = vrot.lane.b32.xlu0 %v333, 64
    %v336 = vpop.permute.xlu0 %335
    %v338 = vmul.f32 %v320, %v336
    %vm339 = vcmp.gt.s32.totalorder %v182, 1
    %v340 = vsel %vm339, %v332, %v265
    %v341 = vsel %vm339, %v338, %v266
    %v342 = vpack.c.bf16 %v341, %v341
    %344 = vrot.lane.b32.xlu0 %v342, 32
    %v345 = vpop.permute.xlu0 %344
    %v347 = vsel %vm195, %v345, 0
    %349 = vmatprep.subr.bf16.mxu0 0
    %350 = vmatpush1.bf16.msra.mxu0 0
    %351 = vmatprep.subr.bf16.mxu0 0
    %352 = vmatpush1.bf16.msra.mxu0 0
    %353 = vmatprep.subr.bf16.mxu0 0
    %354 = vmatpush1.bf16.msra.mxu0 0
    %355 = vmatprep.subr.bf16.mxu0 0
    %356 = vmatpush1.bf16.msra.mxu0 0
    %357 = vmatprep.subr.bf16.mxu0 0
    %358 = vmatpush1.bf16.msra.mxu0 0
    %359 = vmatprep.subr.bf16.mxu0 0
    %360 = vmatpush1.bf16.msra.mxu0 0
    %361 = vmatprep.subr.bf16.mxu0 0
    %362 = vmatpush1.bf16.msra.mxu0 %v192
    %363 = vmatprep.subr.bf16.mxu0 0
    %364 = vmatpush1.bf16.msra.mxu0 %v191
    %365 = vmatprep.subr.bf16.mxu0 0
    %366 = vmatpush2.bf16.msra.mxu0 0
    %367 = vmatprep.subr.bf16.mxu0 0
    %368 = vmatpush2.bf16.msra.mxu0 0
    %369 = vmatprep.subr.bf16.mxu0 0
    %370 = vmatpush2.bf16.msra.mxu0 0
    %371 = vmatprep.subr.bf16.mxu0 0
    %372 = vmatpush2.bf16.msra.mxu0 0
    %373 = vmatprep.subr.bf16.mxu0 0
    %374 = vmatpush2.bf16.msra.mxu0 0
    %375 = vmatprep.subr.bf16.mxu0 0
    %376 = vmatpush2.bf16.msra.mxu0 0
    %377 = vmatprep.subr.bf16.mxu0 0
    %378 = vmatpush2.bf16.msra.mxu0 0
    %379 = vmatprep.subr.bf16.mxu0 0
    %380 = vmatpush2.bf16.msra.mxu0 0
    %381 = vmatprep.mubr.bf16.mxu0 0
    %382 = vmatmul.mubr.bf16.gmra.mxu0 %v347
    %v383 = vpop.f32.mrf.mxu0
    %v384 = vadd.f32 0.0, %v383
    %v385 = vpop.f32.mrf.mxu0
    %v386 = vpop.f32.mrf.mxu0
    %v387 = vpop.f32.mrf.mxu0
    %388 = vdwg.mxu0
    %v389 = vadd.f32 %v147, %v384
    %v390 = vxor.u32 %v389, 2147483648
    %v391 = vmul.f32 %v390, 1.442695
    %v392 = vpow.pop %v391
    %v393 = vadd.f32 %v392, 1.0
    %v394 = vrcp.pop %v393
    %v395 = vmul.f32 1.0, %v394
    %v396 = vtanh.pop %v389
    %v397 = vmul.f32 %v395, %v340
    %399 = vrot.lane.b32.xlu0 %v396, 64
    %v400 = vpop.permute.xlu0 %399
    %v402 = vmul.f32 %v395, %v400
    %404 = vrot.lane.b32.xlu0 %v402, 32
    %v405 = vpop.permute.xlu0 %404
    %v407 = vadd.f32 %v397, %v405
    %v408 = vtanh.pop %v407
    %410 = vrot.lane.b32.xlu0 %v408, 64
    %v411 = vpop.permute.xlu0 %410
    %v413 = vmul.f32 %v395, %v411
    %vm414 = vcmp.gt.s32.totalorder %v182, 2
    %v415 = vsel %vm414, %v407, %v340
    %v416 = vsel %vm414, %v413, %v341
    %v417 = vpack.c.bf16 %v416, %v416
    %419 = vrot.lane.b32.xlu0 %v417, 32
    %v420 = vpop.permute.xlu0 %419
    %v422 = vsel %vm195, %v420, 0
    %424 = vmatprep.subr.bf16.mxu0 0
    %425 = vmatpush1.bf16.msra.mxu0 0
    %426 = vmatprep.subr.bf16.mxu0 0
    %427 = vmatpush1.bf16.msra.mxu0 0
    %428 = vmatprep.subr.bf16.mxu0 0
    %429 = vmatpush1.bf16.msra.mxu0 0
    %430 = vmatprep.subr.bf16.mxu0 0
    %431 = vmatpush1.bf16.msra.mxu0 0
    %432 = vmatprep.subr.bf16.mxu0 0
    %433 = vmatpush1.bf16.msra.mxu0 0
    %434 = vmatprep.subr.bf16.mxu0 0
    %435 = vmatpush1.bf16.msra.mxu0 0
    %436 = vmatprep.subr.bf16.mxu0 0
    %437 = vmatpush1.bf16.msra.mxu0 %v192
    %438 = vmatprep.subr.bf16.mxu0 0
    %439 = vmatpush1.bf16.msra.mxu0 %v191
    %440 = vmatprep.subr.bf16.mxu0 0
    %441 = vmatpush2.bf16.msra.mxu0 0
    %442 = vmatprep.subr.bf16.mxu0 0
    %443 = vmatpush2.bf16.msra.mxu0 0
    %444 = vmatprep.subr.bf16.mxu0 0
    %445 = vmatpush2.bf16.msra.mxu0 0
    %446 = vmatprep.subr.bf16.mxu0 0
    %447 = vmatpush2.bf16.msra.mxu0 0
    %448 = vmatprep.subr.bf16.mxu0 0
    %449 = vmatpush2.bf16.msra.mxu0 0
    %450 = vmatprep.subr.bf16.mxu0 0
    %451 = vmatpush2.bf16.msra.mxu0 0
    %452 = vmatprep.subr.bf16.mxu0 0
    %453 = vmatpush2.bf16.msra.mxu0 0
    %454 = vmatprep.subr.bf16.mxu0 0
    %455 = vmatpush2.bf16.msra.mxu0 0
    %456 = vmatprep.mubr.bf16.mxu0 0
    %457 = vmatmul.mubr.bf16.gmra.mxu0 %v422
    %v458 = vpop.f32.mrf.mxu0
    %v459 = vadd.f32 0.0, %v458
    %v460 = vpop.f32.mrf.mxu0
    %v461 = vpop.f32.mrf.mxu0
    %v462 = vpop.f32.mrf.mxu0
    %463 = vdwg.mxu0
    %v464 = vadd.f32 %v152, %v459
    %v465 = vxor.u32 %v464, 2147483648
    %v466 = vmul.f32 %v465, 1.442695
    %v467 = vpow.pop %v466
    %v468 = vadd.f32 %v467, 1.0
    %v469 = vrcp.pop %v468
    %v470 = vmul.f32 1.0, %v469
    %v471 = vtanh.pop %v464
    %v472 = vmul.f32 %v470, %v415
    %474 = vrot.lane.b32.xlu0 %v471, 64
    %v475 = vpop.permute.xlu0 %474
    %v477 = vmul.f32 %v470, %v475
    %479 = vrot.lane.b32.xlu0 %v477, 32
    %v480 = vpop.permute.xlu0 %479
    %v482 = vadd.f32 %v472, %v480
    %v483 = vtanh.pop %v482
    %485 = vrot.lane.b32.xlu0 %v483, 64
    %v486 = vpop.permute.xlu0 %485
    %v488 = vmul.f32 %v470, %v486
    %vm489 = vcmp.gt.s32.totalorder %v182, 3
    %v490 = vsel %vm489, %v482, %v415
    %v491 = vsel %vm489, %v488, %v416
    %v492 = vpack.c.bf16 %v491, %v491
    %494 = vrot.lane.b32.xlu0 %v492, 32
    %v495 = vpop.permute.xlu0 %494
    %v497 = vsel %vm195, %v495, 0
    %499 = vmatprep.subr.bf16.mxu0 0
    %500 = vmatpush1.bf16.msra.mxu0 0
    %501 = vmatprep.subr.bf16.mxu0 0
    %502 = vmatpush1.bf16.msra.mxu0 0
    %503 = vmatprep.subr.bf16.mxu0 0
    %504 = vmatpush1.bf16.msra.mxu0 0
    %505 = vmatprep.subr.bf16.mxu0 0
    %506 = vmatpush1.bf16.msra.mxu0 0
    %507 = vmatprep.subr.bf16.mxu0 0
    %508 = vmatpush1.bf16.msra.mxu0 0
    %509 = vmatprep.subr.bf16.mxu0 0
    %510 = vmatpush1.bf16.msra.mxu0 0
    %511 = vmatprep.subr.bf16.mxu0 0
    %512 = vmatpush1.bf16.msra.mxu0 %v192
    %513 = vmatprep.subr.bf16.mxu0 0
    %514 = vmatpush1.bf16.msra.mxu0 %v191
    %515 = vmatprep.subr.bf16.mxu0 0
    %516 = vmatpush2.bf16.msra.mxu0 0
    %517 = vmatprep.subr.bf16.mxu0 0
    %518 = vmatpush2.bf16.msra.mxu0 0
    %519 = vmatprep.subr.bf16.mxu0 0
    %520 = vmatpush2.bf16.msra.mxu0 0
    %521 = vmatprep.subr.bf16.mxu0 0
    %522 = vmatpush2.bf16.msra.mxu0 0
    %523 = vmatprep.subr.bf16.mxu0 0
    %524 = vmatpush2.bf16.msra.mxu0 0
    %525 = vmatprep.subr.bf16.mxu0 0
    %526 = vmatpush2.bf16.msra.mxu0 0
    %527 = vmatprep.subr.bf16.mxu0 0
    %528 = vmatpush2.bf16.msra.mxu0 0
    %529 = vmatprep.subr.bf16.mxu0 0
    %530 = vmatpush2.bf16.msra.mxu0 0
    %531 = vmatprep.mubr.bf16.mxu0 0
    %532 = vmatmul.mubr.bf16.gmra.mxu0 %v497
    %v533 = vpop.f32.mrf.mxu0
    %v534 = vadd.f32 0.0, %v533
    %v535 = vpop.f32.mrf.mxu0
    %v536 = vpop.f32.mrf.mxu0
    %v537 = vpop.f32.mrf.mxu0
    %538 = vdwg.mxu0
    %v539 = vadd.f32 %v157, %v534
    %v540 = vxor.u32 %v539, 2147483648
    %v541 = vmul.f32 %v540, 1.442695
    %v542 = vpow.pop %v541
    %v543 = vadd.f32 %v542, 1.0
    %v544 = vrcp.pop %v543
    %v545 = vmul.f32 1.0, %v544
    %v546 = vtanh.pop %v539
    %v547 = vmul.f32 %v545, %v490
    %549 = vrot.lane.b32.xlu0 %v546, 64
    %v550 = vpop.permute.xlu0 %549
    %v552 = vmul.f32 %v545, %v550
    %554 = vrot.lane.b32.xlu0 %v552, 32
    %v555 = vpop.permute.xlu0 %554
    %v557 = vadd.f32 %v547, %v555
    %v558 = vtanh.pop %v557
    %560 = vrot.lane.b32.xlu0 %v558, 64
    %v561 = vpop.permute.xlu0 %560
    %v563 = vmul.f32 %v545, %v561
    %vm564 = vcmp.gt.s32.totalorder %v182, 4
    %v565 = vsel %vm564, %v557, %v490
    %v566 = vsel %vm564, %v563, %v491
    %v567 = vpack.c.bf16 %v566, %v566
    %569 = vrot.lane.b32.xlu0 %v567, 32
    %v570 = vpop.permute.xlu0 %569
    %v572 = vsel %vm195, %v570, 0
    %574 = vmatprep.subr.bf16.mxu0 0
    %575 = vmatpush1.bf16.msra.mxu0 0
    %576 = vmatprep.subr.bf16.mxu0 0
    %577 = vmatpush1.bf16.msra.mxu0 0
    %578 = vmatprep.subr.bf16.mxu0 0
    %579 = vmatpush1.bf16.msra.mxu0 0
    %580 = vmatprep.subr.bf16.mxu0 0
    %581 = vmatpush1.bf16.msra.mxu0 0
    %582 = vmatprep.subr.bf16.mxu0 0
    %583 = vmatpush1.bf16.msra.mxu0 0
    %584 = vmatprep.subr.bf16.mxu0 0
    %585 = vmatpush1.bf16.msra.mxu0 0
    %586 = vmatprep.subr.bf16.mxu0 0
    %587 = vmatpush1.bf16.msra.mxu0 %v192
    %588 = vmatprep.subr.bf16.mxu0 0
    %589 = vmatpush1.bf16.msra.mxu0 %v191
    %590 = vmatprep.subr.bf16.mxu0 0
    %591 = vmatpush2.bf16.msra.mxu0 0
    %592 = vmatprep.subr.bf16.mxu0 0
    %593 = vmatpush2.bf16.msra.mxu0 0
    %594 = vmatprep.subr.bf16.mxu0 0
    %595 = vmatpush2.bf16.msra.mxu0 0
    %596 = vmatprep.subr.bf16.mxu0 0
    %597 = vmatpush2.bf16.msra.mxu0 0
    %598 = vmatprep.subr.bf16.mxu0 0
    %599 = vmatpush2.bf16.msra.mxu0 0
    %600 = vmatprep.subr.bf16.mxu0 0
    %601 = vmatpush2.bf16.msra.mxu0 0
    %602 = vmatprep.subr.bf16.mxu0 0
    %603 = vmatpush2.bf16.msra.mxu0 0
    %604 = vmatprep.subr.bf16.mxu0 0
    %605 = vmatpush2.bf16.msra.mxu0 0
    %606 = vmatprep.mubr.bf16.mxu0 0
    %607 = vmatmul.mubr.bf16.gmra.mxu0 %v572
    %v608 = vpop.f32.mrf.mxu0
    %v609 = vadd.f32 0.0, %v608
    %v610 = vpop.f32.mrf.mxu0
    %v611 = vpop.f32.mrf.mxu0
    %v612 = vpop.f32.mrf.mxu0
    %613 = vdwg.mxu0
    %v614 = vadd.f32 %v162, %v609
    %v615 = vxor.u32 %v614, 2147483648
    %v616 = vmul.f32 %v615, 1.442695
    %v617 = vpow.pop %v616
    %v618 = vadd.f32 %v617, 1.0
    %v619 = vrcp.pop %v618
    %v620 = vmul.f32 1.0, %v619
    %v621 = vtanh.pop %v614
    %v622 = vmul.f32 %v620, %v565
    %624 = vrot.lane.b32.xlu0 %v621, 64
    %v625 = vpop.permute.xlu0 %624
    %v627 = vmul.f32 %v620, %v625
    %629 = vrot.lane.b32.xlu0 %v627, 32
    %v630 = vpop.permute.xlu0 %629
    %v632 = vadd.f32 %v622, %v630
    %v633 = vtanh.pop %v632
    %635 = vrot.lane.b32.xlu0 %v633, 64
    %v636 = vpop.permute.xlu0 %635
    %v638 = vmul.f32 %v620, %v636
    %vm639 = vcmp.gt.s32.totalorder %v182, 5
    %v640 = vsel %vm639, %v632, %v565
    %v641 = vsel %vm639, %v638, %v566
    %v642 = vpack.c.bf16 %v641, %v641
    %644 = vrot.lane.b32.xlu0 %v642, 32
    %v645 = vpop.permute.xlu0 %644
    %v647 = vsel %vm195, %v645, 0
    %649 = vmatprep.subr.bf16.mxu0 0
    %650 = vmatpush1.bf16.msra.mxu0 0
    %651 = vmatprep.subr.bf16.mxu0 0
    %652 = vmatpush1.bf16.msra.mxu0 0
    %653 = vmatprep.subr.bf16.mxu0 0
    %654 = vmatpush1.bf16.msra.mxu0 0
    %655 = vmatprep.subr.bf16.mxu0 0
    %656 = vmatpush1.bf16.msra.mxu0 0
    %657 = vmatprep.subr.bf16.mxu0 0
    %658 = vmatpush1.bf16.msra.mxu0 0
    %659 = vmatprep.subr.bf16.mxu0 0
    %660 = vmatpush1.bf16.msra.mxu0 0
    %661 = vmatprep.subr.bf16.mxu0 0
    %662 = vmatpush1.bf16.msra.mxu0 %v192
    %663 = vmatprep.subr.bf16.mxu0 0
    %664 = vmatpush1.bf16.msra.mxu0 %v191
    %665 = vmatprep.subr.bf16.mxu0 0
    %666 = vmatpush2.bf16.msra.mxu0 0
    %667 = vmatprep.subr.bf16.mxu0 0
    %668 = vmatpush2.bf16.msra.mxu0 0
    %669 = vmatprep.subr.bf16.mxu0 0
    %670 = vmatpush2.bf16.msra.mxu0 0
    %671 = vmatprep.subr.bf16.mxu0 0
    %672 = vmatpush2.bf16.msra.mxu0 0
    %673 = vmatprep.subr.bf16.mxu0 0
    %674 = vmatpush2.bf16.msra.mxu0 0
    %675 = vmatprep.subr.bf16.mxu0 0
    %676 = vmatpush2.bf16.msra.mxu0 0
    %677 = vmatprep.subr.bf16.mxu0 0
    %678 = vmatpush2.bf16.msra.mxu0 0
    %679 = vmatprep.subr.bf16.mxu0 0
    %680 = vmatpush2.bf16.msra.mxu0 0
    %681 = vmatprep.mubr.bf16.mxu0 0
    %682 = vmatmul.mubr.bf16.gmra.mxu0 %v647
    %v683 = vpop.f32.mrf.mxu0
    %v684 = vadd.f32 0.0, %v683
    %v685 = vpop.f32.mrf.mxu0
    %v686 = vpop.f32.mrf.mxu0
    %v687 = vpop.f32.mrf.mxu0
    %688 = vdwg.mxu0
    %v689 = vadd.f32 %v167, %v684
    %v690 = vxor.u32 %v689, 2147483648
    %v691 = vmul.f32 %v690, 1.442695
    %v692 = vpow.pop %v691
    %v693 = vadd.f32 %v692, 1.0
    %v694 = vrcp.pop %v693
    %v695 = vmul.f32 1.0, %v694
    %v696 = vtanh.pop %v689
    %v697 = vmul.f32 %v695, %v640
    %699 = vrot.lane.b32.xlu0 %v696, 64
    %v700 = vpop.permute.xlu0 %699
    %v702 = vmul.f32 %v695, %v700
    %704 = vrot.lane.b32.xlu0 %v702, 32
    %v705 = vpop.permute.xlu0 %704
    %v707 = vadd.f32 %v697, %v705
    %v708 = vtanh.pop %v707
    %710 = vrot.lane.b32.xlu0 %v708, 64
    %v711 = vpop.permute.xlu0 %710
    %v713 = vmul.f32 %v695, %v711
    %vm714 = vcmp.gt.s32.totalorder %v182, 6
    %v715 = vsel %vm714, %v707, %v640
    %v716 = vsel %vm714, %v713, %v641
    %v717 = vpack.c.bf16 %v716, %v716
    %719 = vrot.lane.b32.xlu0 %v717, 32
    %v720 = vpop.permute.xlu0 %719
    %v722 = vsel %vm195, %v720, 0
    %724 = vmatprep.subr.bf16.mxu0 0
    %725 = vmatpush1.bf16.msra.mxu0 0
    %726 = vmatprep.subr.bf16.mxu0 0
    %727 = vmatpush1.bf16.msra.mxu0 0
    %728 = vmatprep.subr.bf16.mxu0 0
    %729 = vmatpush1.bf16.msra.mxu0 0
    %730 = vmatprep.subr.bf16.mxu0 0
    %731 = vmatpush1.bf16.msra.mxu0 0
    %732 = vmatprep.subr.bf16.mxu0 0
    %733 = vmatpush1.bf16.msra.mxu0 0
    %734 = vmatprep.subr.bf16.mxu0 0
    %735 = vmatpush1.bf16.msra.mxu0 0
    %736 = vmatprep.subr.bf16.mxu0 0
    %737 = vmatpush1.bf16.msra.mxu0 %v192
    %738 = vmatprep.subr.bf16.mxu0 0
    %739 = vmatpush1.bf16.msra.mxu0 %v191
    %740 = vmatprep.subr.bf16.mxu0 0
    %741 = vmatpush2.bf16.msra.mxu0 0
    %742 = vmatprep.subr.bf16.mxu0 0
    %743 = vmatpush2.bf16.msra.mxu0 0
    %744 = vmatprep.subr.bf16.mxu0 0
    %745 = vmatpush2.bf16.msra.mxu0 0
    %746 = vmatprep.subr.bf16.mxu0 0
    %747 = vmatpush2.bf16.msra.mxu0 0
    %748 = vmatprep.subr.bf16.mxu0 0
    %749 = vmatpush2.bf16.msra.mxu0 0
    %750 = vmatprep.subr.bf16.mxu0 0
    %751 = vmatpush2.bf16.msra.mxu0 0
    %752 = vmatprep.subr.bf16.mxu0 0
    %753 = vmatpush2.bf16.msra.mxu0 0
    %754 = vmatprep.subr.bf16.mxu0 0
    %755 = vmatpush2.bf16.msra.mxu0 0
    %756 = vmatprep.mubr.bf16.mxu0 0
    %757 = vmatmul.mubr.bf16.gmra.mxu0 %v722
    %v758 = vpop.f32.mrf.mxu0
    %v759 = vadd.f32 0.0, %v758
    %v760 = vpop.f32.mrf.mxu0
    %v761 = vpop.f32.mrf.mxu0
    %v762 = vpop.f32.mrf.mxu0
    %763 = vdwg.mxu0
    %v764 = vadd.f32 %v172, %v759
    %v765 = vxor.u32 %v764, 2147483648
    %v766 = vmul.f32 %v765, 1.442695
    %v767 = vpow.pop %v766
    %v768 = vadd.f32 %v767, 1.0
    %v769 = vrcp.pop %v768
    %v770 = vmul.f32 1.0, %v769
    %v771 = vtanh.pop %v764
    %v772 = vmul.f32 %v770, %v715
    %774 = vrot.lane.b32.xlu0 %v771, 64
    %v775 = vpop.permute.xlu0 %774
    %v777 = vmul.f32 %v770, %v775
    %779 = vrot.lane.b32.xlu0 %v777, 32
    %v780 = vpop.permute.xlu0 %779
    %v782 = vadd.f32 %v772, %v780
    %v783 = vtanh.pop %v782
    %785 = vrot.lane.b32.xlu0 %v783, 64
    %v786 = vpop.permute.xlu0 %785
    %v788 = vmul.f32 %v770, %v786
    %vm789 = vcmp.gt.s32.totalorder %v182, 7
    %v790 = vsel %vm789, %v788, %v716
    %v791 = vld [vmem:[%s5] sm:$0xff]
    %v792 = vld [vmem:[%s5 + $0x8] sm:$0xff]
    %v793 = vld [vmem:[%s5 + $0x10] sm:$0xff]
    %v794 = vld [vmem:[%s5 + $0x18] sm:$0xff]
    %v795 = vld [vmem:[%s6] sm:$0x1]
    %v797 = vlaneseq
    %v798 = vshrl.u32 %v797, 7
    %v799 = vsub.s32 0, %v798
    %v800 = vrot.slane %v795, %v799
    %803 = vrot.lane.b32.xlu0 %v790, 32
    %v804 = vpop.permute.xlu0 %803
    %v805 = vsel %vm195, %v804, 0
    %807 = vmatprep.subr.mxu0 0.0
    %808 = vmatpush1.msra.mxu0 0.0
    %809 = vmatprep.subr.mxu0 0.0
    %810 = vmatpush1.msra.mxu0 0.0
    %811 = vmatprep.subr.mxu0 0.0
    %812 = vmatpush1.msra.mxu0 0.0
    %813 = vmatprep.subr.mxu0 0.0
    %814 = vmatpush1.msra.mxu0 0.0
    %815 = vmatprep.subr.mxu0 0.0
    %816 = vmatpush1.msra.mxu0 0.0
    %817 = vmatprep.subr.mxu0 0.0
    %818 = vmatpush1.msra.mxu0 0.0
    %819 = vmatprep.subr.mxu0 0.0
    %820 = vmatpush1.msra.mxu0 0.0
    %821 = vmatprep.subr.mxu0 0.0
    %822 = vmatpush1.msra.mxu0 0.0
    %823 = vmatprep.subr.mxu0 0.0
    %824 = vmatpush1.msra.mxu0 0.0
    %825 = vmatprep.subr.mxu0 0.0
    %826 = vmatpush1.msra.mxu0 0.0
    %827 = vmatprep.subr.mxu0 0.0
    %828 = vmatpush1.msra.mxu0 0.0
    %829 = vmatprep.subr.mxu0 0.0
    %830 = vmatpush1.msra.mxu0 0.0
    %831 = vmatprep.subr.mxu0 0.0
    %832 = vmatpush1.msra.mxu0 %v794
    %833 = vmatprep.subr.mxu0 0.0
    %834 = vmatpush1.msra.mxu0 %v793
    %835 = vmatprep.subr.mxu0 0.0
    %836 = vmatpush1.msra.mxu0 %v792
    %837 = vmatprep.subr.mxu0 0.0
    %838 = vmatpush1.msra.mxu0 %v791
    %839 = vmatprep.subr.mxu0 0.0
    %840 = vmatpush2.msra.mxu0 0.0
    %841 = vmatprep.subr.mxu0 0.0
    %842 = vmatpush2.msra.mxu0 0.0
    %843 = vmatprep.subr.mxu0 0.0
    %844 = vmatpush2.msra.mxu0 0.0
    %845 = vmatprep.subr.mxu0 0.0
    %846 = vmatpush2.msra.mxu0 0.0
    %847 = vmatprep.subr.mxu0 0.0
    %848 = vmatpush2.msra.mxu0 0.0
    %849 = vmatprep.subr.mxu0 0.0
    %850 = vmatpush2.msra.mxu0 0.0
    %851 = vmatprep.subr.mxu0 0.0
    %852 = vmatpush2.msra.mxu0 0.0
    %853 = vmatprep.subr.mxu0 0.0
    %854 = vmatpush2.msra.mxu0 0.0
    %855 = vmatprep.subr.mxu0 0.0
    %856 = vmatpush2.msra.mxu0 0.0
    %857 = vmatprep.subr.mxu0 0.0
    %858 = vmatpush2.msra.mxu0 0.0
    %859 = vmatprep.subr.mxu0 0.0
    %860 = vmatpush2.msra.mxu0 0.0
    %861 = vmatprep.subr.mxu0 0.0
    %862 = vmatpush2.msra.mxu0 0.0
    %863 = vmatprep.subr.mxu0 0.0
    %864 = vmatpush2.msra.mxu0 0.0
    %865 = vmatprep.subr.mxu0 0.0
    %866 = vmatpush2.msra.mxu0 0.0
    %867 = vmatprep.subr.mxu0 0.0
    %868 = vmatpush2.msra.mxu0 0.0
    %869 = vmatprep.subr.mxu0 0.0
    %870 = vmatpush2.msra.mxu0 0.0
    %871 = vmatprep.mubr.f32.mxu0 0.0
    %872 = vmatmul.mubr.f32.gmra.mxu0 %v805
    %v873 = vpop.f32.mrf.mxu0
    %v874 = vadd.f32 %v800, %v873
    %v875 = vpop.f32.mrf.mxu0
    %876 = vdwg.mxu0
    %vm877 = vcmask 64512
    %878 = vst.msk [vmem:[#allocation2] sm:$0xff] %vm877, %v874
    // Predicated region
    $region30: #{lstm_model_forward.1} parent=1 // pred_check
      _
    $region31: #{lstm_model_forward.1} parent=1 // pred_check_branch
      %880 = sbr.rel (0) target = $region33
    $region32: #{lstm_model_forward.1} parent=1 // pred_region
      %s882 = ssub.s32 128, 128
      %883 = vsyncadd [#allocation3], %s882
      %s885 = sshll.u32 [#allocation2], 4
      %s886 = int_to_ptr.vmem [resolvable:$true] %s885
      %888 = dma.vmem_to_hbm [thread:$0]  %s886, 128, %s7, [#allocation3]
    $region33: #{lstm_model_forward.1} parent=1 // pred_fallthru
      _
    // Predicated region
    $region34: #{lstm_model_forward.1} parent=1 // pred_check
      _
    $region35: #{lstm_model_forward.1} parent=1 // pred_check_branch
      %890 = sbr.rel (0) target = $region37
    $region36: #{lstm_model_forward.1} parent=1 // pred_region
      %891 = dma.done [#allocation3], 128
    $region37: #{lstm_model_forward.1} parent=1 // pred_fallthru
      _
    %892 = vsyncpa [#allocation3], 1

</llo_original>
